<compile_context>
chip_gen: v5e
topology: v5e:2x2
jax: 0.10.0
libtpu: 0.0.40
codegen_flags: <defaults>
</compile_context>

<pallas_src>
import functools

import jax
import jax.numpy as jnp
from jax.experimental import pallas as pl
from jax.experimental.pallas import tpu as pltpu


def _round_up(x, m):
    return ((x + m - 1) // m) * m


def _pick_batch_block(B, T):
    """Batch elements per grid step: target ~256 rows for the flattened matmuls,
    but keep >= 2 grid steps when B >= 2 (v7x has 2 TensorCores)."""
    bb = max(1, min(B, 256 // max(T, 1)))
    if B >= 2 and -(-B // bb) < 2:
        bb = max(1, B // 2)
    while B % bb:          # keep blocks even (no ragged last block)
        bb -= 1
    return bb


def _pick_s_chunk(T, S, Dmem, budget_bytes=4 << 20):
    """Source-length chunk so the live tanh intermediate (T, Sc, Dmem) stays small."""
    if S <= 128:
        return S
    per_col = max(1, T * Dmem * 4)
    sc = min(S, max(128, (budget_bytes // per_col) // 128 * 128))
    while S % sc and sc > 128:
        sc -= 128
    return sc if S % sc == 0 else S


def _vmem_limit_bytes(Bb, T, S, Sc, Din, Dmem, Din_pad, S_pad):
    f32 = 4
    io = 2 * Bb * (T * Din + S * Dmem) * f32            # double-buffered input blocks
    io += 2 * Bb * T * (Din_pad + S_pad) * f32          # double-buffered output blocks
    w = 2 * (Din * Dmem + Dmem * Dmem + 2 * Dmem
             + (Dmem + Din) * Din_pad + Din_pad) * f32  # weight blocks
    live = (T * Sc * Dmem                               # tanh chunk
            + Bb * T * (2 * Dmem + S)                   # wq rows, scores/align, context rows
            + Bb * S * Dmem) * f32                      # uh rows
    est = io + w + live
    return int(min(max(2 * est, 32 << 20), 64 << 20))


def _attention_kernel(lens_ref,                         # SMEM (B,) int32 (scalar prefetch)
                      q_ref, m_ref,                     # (Bb,T,Din), (Bb,S,Dmem)
                      wq_t_ref, wc_t_ref, bc_ref, v_ref, wout_t_ref, bo_ref,
                      out_ref, align_ref,               # (Bb,T,Din_pad), (Bb,T,S_pad)
                      *, s_chunk):
    Bb, T, Din = q_ref.shape
    _, S, Dmem = m_ref.shape
    Din_pad = out_ref.shape[-1]
    S_pad = align_ref.shape[-1]
    n_chunks = S // s_chunk
    b0 = pl.program_id(0) * Bb

    # Row-flattened projections: one wide MXU matmul each instead of Bb tiny ones.
    q2 = q_ref[...].reshape(Bb * T, Din)                                   # (Bb*T, Din)
    m2 = m_ref[...].reshape(Bb * S, Dmem)                                  # (Bb*S, Dmem)
    wq2 = jnp.dot(q2, wq_t_ref[...], preferred_element_type=jnp.float32)   # (Bb*T, Dmem)
    uh2 = (jnp.dot(m2, wc_t_ref[...], preferred_element_type=jnp.float32)
           + bc_ref[...])                                                  # (Bb*S, Dmem)

    v = v_ref[0]                                                           # (Dmem,)
    col = jax.lax.broadcasted_iota(jnp.int32, (T, S), 1)                   # hoisted mask iota
    neg = jnp.float32(-1e30)     # finite "-inf": safe for fully-masked rows / bf16

    c_rows = []
    for b in range(Bb):          # static, small, fully unrolled
        wq_b = wq2[b * T:(b + 1) * T, :]                                   # (T, Dmem)

        # score(t, s) = v . tanh(wq[t] + uh[s]), tiled over S so the live tanh
        # intermediate is (T, s_chunk, Dmem) instead of (T, S, Dmem).
        parts = []
        for ci in range(n_chunks):
            lo = b * S + ci * s_chunk
            uh_c = uh2[lo:lo + s_chunk, :]                                 # (Sc, Dmem)
            wquh = jnp.tanh(wq_b[:, None, :] + uh_c[None, :, :])           # (T, Sc, Dmem)
            # VPU mul + XLU reduce; hides under the EUP-bound tanh stream.
            parts.append(jnp.sum(wquh * v[None, None, :], axis=-1))        # (T, Sc)
        scores = parts[0] if n_chunks == 1 else jnp.concatenate(parts, axis=-1)

        # In-kernel length mask (no host-side mask array / DMA).
        length = lens_ref[b0 + b]
        scores = jnp.where(col < length, scores, neg)

        # Softmax over source axis; divide -> EUP approx reciprocal + 1 Newton step.
        smax = jnp.max(scores, axis=-1, keepdims=True)
        p = jnp.exp(scores - smax)
        denom = jnp.sum(p, axis=-1, keepdims=True)
        inv = pl.reciprocal(denom, approx=True)
        inv = inv * (2.0 - denom * inv)
        align = p * inv                                                    # (T, S)

        # Lane-dense align store (last dim padded up to a multiple of 128).
        if S_pad > S:
            align_st = jnp.concatenate(
                [align, jnp.zeros((T, S_pad - S), jnp.float32)], axis=-1)
        else:
            align_st = align
        align_ref[b] = align_st.astype(align_ref.dtype)

        # Context vectors for this batch element: c = align @ mems.
        c_rows.append(jnp.dot(align, m_ref[b], preferred_element_type=jnp.float32))

    # Fused output projection: one K=(Dmem+Din) matmul over all Bb*T rows, then a
    # single lane-dense block store.
    c2 = c_rows[0] if Bb == 1 else jnp.concatenate(c_rows, axis=0)          # (Bb*T, Dmem)
    cat = jnp.concatenate([c2, q2], axis=-1)                                # (Bb*T, Dmem+Din)
    attn2 = (jnp.dot(cat, wout_t_ref[...], preferred_element_type=jnp.float32)
             + bo_ref[...])                                                 # (Bb*T, Din_pad)
    out_ref[...] = attn2.reshape(Bb, T, Din_pad).astype(out_ref.dtype)


def attention_forward(inputs, mems, params, mem_lengths=None):
    """inputs: (B,T,Din) f32, mems: (B,S,Dmem) f32, mem_lengths: (B,) int or None.
    Returns (attn_h (B,T,Din), align (B,T,S)) matching the PyTorch module."""
    # TODO(synk): 2-D boolean mem_masks are not supported; only 1-D lengths or None.
    B, T, Din = inputs.shape
    _, S, Dmem = mems.shape

    lengths = (jnp.full((B,), S, dtype=jnp.int32) if mem_lengths is None
               else jnp.asarray(mem_lengths, jnp.int32).reshape(B))

    Bb = _pick_batch_block(B, T)
    Sc = _pick_s_chunk(T, S, Dmem)
    Din_pad = _round_up(Din, 128)      # lane-dense attn_h stores
    S_pad = _round_up(S, 128)          # lane-dense align stores

    # Parameter plumbing (host-side, one-time): pre-transpose; fuse linear_out into a
    # single (Dmem+Din, Din_pad) weight with zero-padded output columns.
    wq_t = params["Wq"].T                                                   # (Din, Dmem)
    wc_t = params["Wc"].T                                                   # (Dmem, Dmem)
    bc = params["bc"].reshape(1, Dmem)
    v = params["v"].reshape(1, Dmem)
    wout_t = jnp.pad(params["Wout"].T, ((0, 0), (0, Din_pad - Din)))        # (Dmem+Din, Din_pad)
    bo = jnp.pad(params["bout"], (0, Din_pad - Din)).reshape(1, Din_pad)

    nb = B // Bb
    batch3 = lambda i, lens: (i, 0, 0)
    full2 = lambda i, lens: (0, 0)

    kernel = functools.partial(_attention_kernel, s_chunk=Sc)

    attn_pad, align_pad = pl.pallas_call(
        kernel,
        grid_spec=pltpu.PrefetchScalarGridSpec(
            num_scalar_prefetch=1,
            grid=(nb,),
            in_specs=[
                pl.BlockSpec((Bb, T, Din), batch3),          # inputs
                pl.BlockSpec((Bb, S, Dmem), batch3),         # mems
                # Grid-invariant weights: constant index_map -> DMA'd once, reused.
                pl.BlockSpec((Din, Dmem), full2),            # Wq^T
                pl.BlockSpec((Dmem, Dmem), full2),           # Wc^T
                pl.BlockSpec((1, Dmem), full2),              # bc
                pl.BlockSpec((1, Dmem), full2),              # v
                pl.BlockSpec((Dmem + Din, Din_pad), full2),  # Wout^T (fused, padded)
                pl.BlockSpec((1, Din_pad), full2),           # bout (padded)
            ],
            out_specs=[
                pl.BlockSpec((Bb, T, Din_pad), batch3),
                pl.BlockSpec((Bb, T, S_pad), batch3),
            ],
        ),
        out_shape=(
            jax.ShapeDtypeStruct((B, T, Din_pad), jnp.float32),
            jax.ShapeDtypeStruct((B, T, S_pad), jnp.float32),
        ),
        compiler_params=pltpu.CompilerParams(
            dimension_semantics=("parallel",),
            vmem_limit_bytes=_vmem_limit_bytes(Bb, T, S, Sc, Din, Dmem, Din_pad, S_pad),
        ),
    )(lengths, inputs, mems, wq_t, wc_t, bc, v, wout_t, bo)

    return attn_pad[..., :Din], align_pad[..., :S]


def _reference_forward(inputs, mems, params, mem_lengths=None):
    """Pure-JAX reference mirroring the PyTorch forward (for correctness check)."""
    B, T, Din = inputs.shape
    _, S, Dmem = mems.shape
    wq = inputs @ params["Wq"].T                                     # (B,T,Dmem)
    uh = mems @ params["Wc"].T + params["bc"]                        # (B,S,Dmem)
    wquh = jnp.tanh(wq[:, :, None, :] + uh[:, None, :, :])           # (B,T,S,Dmem)
    align = jnp.einsum("btsd,d->bts", wquh, params["v"].reshape(-1))
    if mem_lengths is not None:
        mask = (jnp.arange(S) < mem_lengths[:, None])[:, None, :]    # (B,1,S)
        align = jnp.where(mask, align, -jnp.inf)
    av = jax.nn.softmax(align, axis=-1)
    c = jnp.einsum("bts,bsd->btd", av, mems)
    cat = jnp.concatenate([c, inputs], axis=-1)
    attn_h = cat @ params["Wout"].T + params["bout"]
    return attn_h, av


def _init_params(key, input_size, mem_size):
    ks = jax.random.split(key, 6)
    scale = 0.1
    return {
        "Wq":   scale * jax.random.normal(ks[0], (mem_size, input_size), jnp.float32),
        "Wc":   scale * jax.random.normal(ks[1], (mem_size, mem_size), jnp.float32),
        "bc":   scale * jax.random.normal(ks[2], (mem_size,), jnp.float32),
        "v":    scale * jax.random.normal(ks[3], (1, mem_size), jnp.float32),
        "Wout": scale * jax.random.normal(ks[4], (input_size, mem_size + input_size), jnp.float32),
        "bout": scale * jax.random.normal(ks[5], (input_size,), jnp.float32),
    }


if __name__ == "__main__":
    B, T, S = 2, 8, 8
    input_size, mem_size = 32, 32

    key = jax.random.PRNGKey(0)
    k_in, k_mem, k_par = jax.random.split(key, 3)
    inputs = jax.random.normal(k_in, (B, T, input_size), jnp.float32)
    mems = jax.random.normal(k_mem, (B, S, mem_size), jnp.float32)
    mem_lengths = jnp.array([S, 5], dtype=jnp.int32)   # 1-D lengths -> sequence_mask path
    params = _init_params(k_par, input_size, mem_size)

    attn_h, align = attention_forward(inputs, mems, params, mem_lengths)
    jax.block_until_ready((attn_h, align))

    ref_h, ref_align = _reference_forward(inputs, mems, params, mem_lengths)
    assert attn_h.shape == ref_h.shape and align.shape == ref_align.shape
    assert jnp.allclose(attn_h, ref_h, atol=5e-4, rtol=5e-4)
    assert jnp.allclose(align, ref_align, atol=5e-4, rtol=5e-4)

    print("KERNEL_OK")
</pallas_src>

<mosaic_0001>
module attributes {stable_mosaic.version = 11 : i64} {
  func.func @_attention_kernel(%arg0: i32, %arg1: memref<2xi32, #tpu.memory_space<smem>>, %arg2: memref<1x8x32xf32, #tpu.memory_space<vmem>>, %arg3: memref<1x8x32xf32, #tpu.memory_space<vmem>>, %arg4: memref<32x32xf32, #tpu.memory_space<vmem>>, %arg5: memref<32x32xf32, #tpu.memory_space<vmem>>, %arg6: memref<1x32xf32, #tpu.memory_space<vmem>>, %arg7: memref<1x32xf32, #tpu.memory_space<vmem>>, %arg8: memref<64x128xf32, #tpu.memory_space<vmem>>, %arg9: memref<1x128xf32, #tpu.memory_space<vmem>>, %arg10: memref<1x8x128xf32, #tpu.memory_space<vmem>>, %arg11: memref<1x8x128xf32, #tpu.memory_space<vmem>>) attributes {dimension_semantics = [#tpu.dimension_semantics<parallel>], iteration_bounds = array<i64: 2>, scalar_prefetch = 1 : i64, scratch_operands = 0 : i64, tpu.core_type = #tpu.core_type<tc>, window_params = [{transform_indices = @transform_0, window_bounds = array<i64: 1, 8, 32>}, {transform_indices = @transform_1, window_bounds = array<i64: 1, 8, 32>}, {pipeline_mode = #tpu.pipeline_mode<synchronous>, transform_indices = @transform_2, window_bounds = array<i64: 32, 32>}, {pipeline_mode = #tpu.pipeline_mode<synchronous>, transform_indices = @transform_3, window_bounds = array<i64: 32, 32>}, {pipeline_mode = #tpu.pipeline_mode<synchronous>, transform_indices = @transform_4, window_bounds = array<i64: 1, 32>}, {pipeline_mode = #tpu.pipeline_mode<synchronous>, transform_indices = @transform_5, window_bounds = array<i64: 1, 32>}, {pipeline_mode = #tpu.pipeline_mode<synchronous>, transform_indices = @transform_6, window_bounds = array<i64: 64, 128>}, {pipeline_mode = #tpu.pipeline_mode<synchronous>, transform_indices = @transform_7, window_bounds = array<i64: 1, 128>}, {transform_indices = @transform_8, window_bounds = array<i64: 1, 8, 128>}, {transform_indices = @transform_9, window_bounds = array<i64: 1, 8, 128>}]} {
    %c1_i32 = arith.constant 1 : i32
    %0 = arith.muli %arg0, %c1_i32 : i32
    %c0 = arith.constant 0 : index
    %c0_0 = arith.constant 0 : index
    %c0_1 = arith.constant 0 : index
    %1 = vector.load %arg2[%c0, %c0_0, %c0_1] : memref<1x8x32xf32, #tpu.memory_space<vmem>>, vector<1x8x32xf32>
    %2 = vector.shape_cast %1 : vector<1x8x32xf32> to vector<8x32xf32>
    %c0_2 = arith.constant 0 : index
    %c0_3 = arith.constant 0 : index
    %c0_4 = arith.constant 0 : index
    %3 = vector.load %arg3[%c0_2, %c0_3, %c0_4] : memref<1x8x32xf32, #tpu.memory_space<vmem>>, vector<1x8x32xf32>
    %4 = vector.shape_cast %3 : vector<1x8x32xf32> to vector<8x32xf32>
    %c0_5 = arith.constant 0 : index
    %c0_6 = arith.constant 0 : index
    %5 = vector.load %arg4[%c0_5, %c0_6] : memref<32x32xf32, #tpu.memory_space<vmem>>, vector<32x32xf32>
    %cst = arith.constant dense<0.000000e+00> : vector<8x32xf32>
    %6 = tpu.matmul %2, %5, %cst {dimension_numbers = #tpu.dot_dimension_numbers<[1], [0], [0], [1], [0, 0, 1, 1], [], []>} : vector<8x32xf32>, vector<32x32xf32>, vector<8x32xf32> -> vector<8x32xf32>
    %c0_7 = arith.constant 0 : index
    %c0_8 = arith.constant 0 : index
    %7 = vector.load %arg5[%c0_7, %c0_8] : memref<32x32xf32, #tpu.memory_space<vmem>>, vector<32x32xf32>
    %cst_9 = arith.constant dense<0.000000e+00> : vector<8x32xf32>
    %8 = tpu.matmul %4, %7, %cst_9 {dimension_numbers = #tpu.dot_dimension_numbers<[1], [0], [0], [1], [0, 0, 1, 1], [], []>} : vector<8x32xf32>, vector<32x32xf32>, vector<8x32xf32> -> vector<8x32xf32>
    %c0_10 = arith.constant 0 : index
    %c0_11 = arith.constant 0 : index
    %9 = vector.load %arg6[%c0_10, %c0_11] : memref<1x32xf32, #tpu.memory_space<vmem>>, vector<1x32xf32>
    %10 = vector.broadcast %9 : vector<1x32xf32> to vector<8x32xf32>
    %11 = arith.addf %8, %10 : vector<8x32xf32>
    %c0_12 = arith.constant 0 : index
    %c0_13 = arith.constant 0 : index
    %12 = vector.load %arg7[%c0_12, %c0_13] : memref<1x32xf32, #tpu.memory_space<vmem>>, vector<1x32xf32>
    %13 = vector.shape_cast %12 : vector<1x32xf32> to vector<32xf32>
    %14 = tpu.iota {dimensions = array<i32: 1>} : vector<8x8xi32>
    %15 = vector.shape_cast %6 : vector<8x32xf32> to vector<8x1x32xf32>
    %16 = vector.shape_cast %11 : vector<8x32xf32> to vector<1x8x32xf32>
    %17 = vector.broadcast %15 : vector<8x1x32xf32> to vector<8x8x32xf32>
    %18 = vector.broadcast %16 : vector<1x8x32xf32> to vector<8x8x32xf32>
    %19 = arith.addf %17, %18 : vector<8x8x32xf32>
    %20 = math.tanh %19 : vector<8x8x32xf32>
    %21 = vector.shape_cast %13 : vector<32xf32> to vector<1x1x32xf32>
    %22 = vector.broadcast %21 : vector<1x1x32xf32> to vector<8x8x32xf32>
    %23 = arith.mulf %20, %22 : vector<8x8x32xf32>
    %cst_14 = arith.constant dense<0.000000e+00> : vector<8x8xf32>
    %24 = vector.multi_reduction <add>, %23, %cst_14 [2] : vector<8x8x32xf32> to vector<8x8xf32>
    %c0_i32 = arith.constant 0 : i32
    %25 = arith.addi %0, %c0_i32 : i32
    %26 = arith.index_cast %25 : i32 to index
    %27 = memref.load %arg1[%26] : memref<2xi32, #tpu.memory_space<smem>>
    %28 = vector.broadcast %27 : i32 to vector<8x8xi32>
    %29 = arith.cmpi slt, %14, %28 : vector<8x8xi32>
    %cst_15 = arith.constant -1.000000e+30 : f32
    %30 = vector.broadcast %cst_15 : f32 to vector<8x8xf32>
    %31 = arith.select %29, %24, %30 : vector<8x8xi1>, vector<8x8xf32>
    %cst_16 = arith.constant dense<0xFF800000> : vector<8xf32>
    %32 = vector.multi_reduction <maximumf>, %31, %cst_16 [1] : vector<8x8xf32> to vector<8xf32>
    %33 = vector.shape_cast %32 : vector<8xf32> to vector<8x1xf32>
    %34 = vector.broadcast %33 : vector<8x1xf32> to vector<8x8xf32>
    %35 = arith.subf %31, %34 : vector<8x8xf32>
    %36 = math.exp %35 : vector<8x8xf32>
    %cst_17 = arith.constant dense<0.000000e+00> : vector<8xf32>
    %37 = vector.multi_reduction <add>, %36, %cst_17 [1] : vector<8x8xf32> to vector<8xf32>
    %38 = vector.shape_cast %37 : vector<8xf32> to vector<8x1xf32>
    %39 = tpu.reciprocal %38 {approx = true} : vector<8x1xf32> -> vector<8x1xf32>
    %40 = arith.mulf %38, %39 : vector<8x1xf32>
    %cst_18 = arith.constant 2.000000e+00 : f32
    %41 = vector.broadcast %cst_18 : f32 to vector<8x1xf32>
    %42 = arith.subf %41, %40 : vector<8x1xf32>
    %43 = arith.mulf %39, %42 : vector<8x1xf32>
    %44 = vector.broadcast %43 : vector<8x1xf32> to vector<8x8xf32>
    %45 = arith.mulf %36, %44 : vector<8x8xf32>
    %cst_19 = arith.constant 0.000000e+00 : f32
    %46 = vector.broadcast %cst_19 : f32 to vector<8x120xf32>
    %47 = tpu.concatenate %45, %46 in 1 : vector<8x8xf32>, vector<8x120xf32> -> vector<8x128xf32>
    %c0_20 = arith.constant 0 : index
    %c0_21 = arith.constant 0 : index
    %c0_22 = arith.constant 0 : index
    %48 = vector.load %arg11[%c0_20, %c0_21, %c0_22] : memref<1x8x128xf32, #tpu.memory_space<vmem>>, vector<1x8x128xf32>
    %49 = vector.shape_cast %48 : vector<1x8x128xf32> to vector<8x128xf32>
    %50 = vector.shape_cast %47 : vector<8x128xf32> to vector<1x8x128xf32>
    tpu.vector_store %arg11[%c0_20, %c0_21, %c0_22], %50 {strides = array<i32>} : memref<1x8x128xf32, #tpu.memory_space<vmem>>, vector<1x8x128xf32>,
    %c0_23 = arith.constant 0 : index
    %c0_24 = arith.constant 0 : index
    %c0_25 = arith.constant 0 : index
    %51 = vector.load %arg3[%c0_23, %c0_24, %c0_25] : memref<1x8x32xf32, #tpu.memory_space<vmem>>, vector<1x8x32xf32>
    %52 = vector.shape_cast %51 : vector<1x8x32xf32> to vector<8x32xf32>
    %cst_26 = arith.constant dense<0.000000e+00> : vector<8x32xf32>
    %53 = tpu.matmul %45, %52, %cst_26 {dimension_numbers = #tpu.dot_dimension_numbers<[1], [0], [0], [1], [0, 0, 1, 1], [], []>} : vector<8x8xf32>, vector<8x32xf32>, vector<8x32xf32> -> vector<8x32xf32>
    %54 = tpu.concatenate %53, %2 in 1 : vector<8x32xf32>, vector<8x32xf32> -> vector<8x64xf32>
    %c0_27 = arith.constant 0 : index
    %c0_28 = arith.constant 0 : index
    %55 = vector.load %arg8[%c0_27, %c0_28] : memref<64x128xf32, #tpu.memory_space<vmem>>, vector<64x128xf32>
    %cst_29 = arith.constant dense<0.000000e+00> : vector<8x128xf32>
    %56 = tpu.matmul %54, %55, %cst_29 {dimension_numbers = #tpu.dot_dimension_numbers<[1], [0], [0], [1], [0, 0, 1, 1], [], []>} : vector<8x64xf32>, vector<64x128xf32>, vector<8x128xf32> -> vector<8x128xf32>
    %c0_30 = arith.constant 0 : index
    %c0_31 = arith.constant 0 : index
    %57 = vector.load %arg9[%c0_30, %c0_31] : memref<1x128xf32, #tpu.memory_space<vmem>>, vector<1x128xf32>
    %58 = vector.broadcast %57 : vector<1x128xf32> to vector<8x128xf32>
    %59 = arith.addf %56, %58 : vector<8x128xf32>
    %60 = vector.shape_cast %59 : vector<8x128xf32> to vector<1x8x128xf32>
    %c0_32 = arith.constant 0 : index
    %c0_33 = arith.constant 0 : index
    %c0_34 = arith.constant 0 : index
    %61 = vector.load %arg10[%c0_32, %c0_33, %c0_34] : memref<1x8x128xf32, #tpu.memory_space<vmem>>, vector<1x8x128xf32>
    tpu.vector_store %arg10[%c0_32, %c0_33, %c0_34], %60 {strides = array<i32>} : memref<1x8x128xf32, #tpu.memory_space<vmem>>, vector<1x8x128xf32>,
    return
  }
  func.func @transform_0(%arg0: i32, %arg1: memref<2xi32, #tpu.memory_space<smem>>) -> (i32, i32, i32) {
    %c0_i32 = arith.constant 0 : i32
    %c0_i32_0 = arith.constant 0 : i32
    %c0_i32_1 = arith.constant 0 : i32
    return %arg0, %c0_i32, %c0_i32_0 : i32, i32, i32
  }
  func.func @transform_1(%arg0: i32, %arg1: memref<2xi32, #tpu.memory_space<smem>>) -> (i32, i32, i32) {
    %c0_i32 = arith.constant 0 : i32
    %c0_i32_0 = arith.constant 0 : i32
    %c0_i32_1 = arith.constant 0 : i32
    return %arg0, %c0_i32, %c0_i32_0 : i32, i32, i32
  }
  func.func @transform_2(%arg0: i32, %arg1: memref<2xi32, #tpu.memory_space<smem>>) -> (i32, i32) {
    %c0_i32 = arith.constant 0 : i32
    %c0_i32_0 = arith.constant 0 : i32
    %c0_i32_1 = arith.constant 0 : i32
    return %c0_i32, %c0_i32_0 : i32, i32
  }
  func.func @transform_3(%arg0: i32, %arg1: memref<2xi32, #tpu.memory_space<smem>>) -> (i32, i32) {
    %c0_i32 = arith.constant 0 : i32
    %c0_i32_0 = arith.constant 0 : i32
    %c0_i32_1 = arith.constant 0 : i32
    return %c0_i32, %c0_i32_0 : i32, i32
  }
  func.func @transform_4(%arg0: i32, %arg1: memref<2xi32, #tpu.memory_space<smem>>) -> (i32, i32) {
    %c0_i32 = arith.constant 0 : i32
    %c0_i32_0 = arith.constant 0 : i32
    %c0_i32_1 = arith.constant 0 : i32
    return %c0_i32, %c0_i32_0 : i32, i32
  }
  func.func @transform_5(%arg0: i32, %arg1: memref<2xi32, #tpu.memory_space<smem>>) -> (i32, i32) {
    %c0_i32 = arith.constant 0 : i32
    %c0_i32_0 = arith.constant 0 : i32
    %c0_i32_1 = arith.constant 0 : i32
    return %c0_i32, %c0_i32_0 : i32, i32
  }
  func.func @transform_6(%arg0: i32, %arg1: memref<2xi32, #tpu.memory_space<smem>>) -> (i32, i32) {
    %c0_i32 = arith.constant 0 : i32
    %c0_i32_0 = arith.constant 0 : i32
    %c0_i32_1 = arith.constant 0 : i32
    return %c0_i32, %c0_i32_0 : i32, i32
  }
  func.func @transform_7(%arg0: i32, %arg1: memref<2xi32, #tpu.memory_space<smem>>) -> (i32, i32) {
    %c0_i32 = arith.constant 0 : i32
    %c0_i32_0 = arith.constant 0 : i32
    %c0_i32_1 = arith.constant 0 : i32
    return %c0_i32, %c0_i32_0 : i32, i32
  }
  func.func @transform_8(%arg0: i32, %arg1: memref<2xi32, #tpu.memory_space<smem>>) -> (i32, i32, i32) {
    %c0_i32 = arith.constant 0 : i32
    %c0_i32_0 = arith.constant 0 : i32
    %c0_i32_1 = arith.constant 0 : i32
    return %arg0, %c0_i32, %c0_i32_0 : i32, i32, i32
  }
  func.func @transform_9(%arg0: i32, %arg1: memref<2xi32, #tpu.memory_space<smem>>) -> (i32, i32, i32) {
    %c0_i32 = arith.constant 0 : i32
    %c0_i32_0 = arith.constant 0 : i32
    %c0_i32_1 = arith.constant 0 : i32
    return %arg0, %c0_i32, %c0_i32_0 : i32, i32, i32
  }
}

</mosaic_0001>

<llo_original>
// kernel: tpu_custom_call.1
$region0: #{tpu_custom_call.1}
  #allocation0 [shape = 'u32[]', space=smem, size = 0x4, offset = 0x4, fixed_abs, tag = 'smem constant byte address 0x4 - core index']
  #allocation1 [shape = 'u32[72,128]{1,0:T(1,128)}', space=vmem, size = 0x9000, scoped, tag = 'internal scratch']
  #allocation2 [shape = 's32[1]{0}', space=sflag, size = 0x4, scoped, tag = 'scoped memory for tpu_custom_call.1']
  #allocation3 [shape = 'u8[512]{0}', space=smem, size = 0x200, scoped, tag = 'prefetched SMEM operand 0']
  %s0 = inlined_call_operand.hbm [shape: s32[2], index: 0, kind: input, shape index: {}]
  %s1 = inlined_call_operand.hbm [shape: f32[2,8,32], index: 1, kind: input, shape index: {}]
  %s2 = inlined_call_operand.hbm [shape: f32[2,8,32], index: 2, kind: input, shape index: {}]
  %s3 = inlined_call_operand.hbm [shape: f32[32,32], index: 3, kind: input, shape index: {}]
  %s4 = inlined_call_operand.hbm [shape: f32[32,32], index: 4, kind: input, shape index: {}]
  %s5 = inlined_call_operand.vmem [shape: f32[1,32], index: 5, kind: input, shape index: {}]
  %s6 = inlined_call_operand.vmem [shape: f32[1,32], index: 6, kind: input, shape index: {}]
  %s7 = inlined_call_operand.hbm [shape: f32[64,128], index: 7, kind: input, shape index: {}]
  %s8 = inlined_call_operand.vmem [shape: f32[1,128], index: 8, kind: input, shape index: {}]
  %s9 = inlined_call_operand.hbm [shape: f32[2,8,128], index: 9, kind: output, shape index: {0}]
  %s10 = inlined_call_operand.hbm [shape: f32[2,8,128], index: 10, kind: output, shape index: {1}]
  %11 = xla_tuple %s9, %s10
  %s12 = sld [smem:[#allocation0]]
  $region93: #{tpu_custom_call.1} parent=0
    _
  %s14 = ssub.s32 1, %s12
  %s15 = scalar_select 0, %s14, %s12
  %s17 = sshll.u32 %s0, 4
  %s18 = int_to_ptr.hbm [resolvable:$true] %s17
  %20 = dma.hbm_to_smem %s18, 16, [#allocation3], [#allocation2]
  %22 = dma.done [#allocation2], 16
  %23 = sfence
  $region1: #{tpu_custom_call.1} parent=0
    #allocation4 [shape = 'u8[8192]{0}', space=vmem, size = 0x2000, scoped, tag = 'input window, operand 1']
    #allocation5 [shape = 's32[2]{0}', space=sflag, size = 0x8, scoped, tag = 'scoped memory for tpu_custom_call.1']
    #allocation6 [shape = 's32[2]{0}', space=sflag, size = 0x8, scoped, tag = 'scoped memory for tpu_custom_call.1']
    #allocation7 [shape = 'u8[8192]{0}', space=vmem, size = 0x2000, scoped, tag = 'input window, operand 2']
    #allocation8 [shape = 's32[2]{0}', space=sflag, size = 0x8, scoped, tag = 'scoped memory for tpu_custom_call.1']
    #allocation9 [shape = 'u8[16384]{0}', space=vmem, size = 0x4000, scoped, tag = 'input window, operand 3, single buffered']
    #allocation10 [shape = 'u8[16384]{0}', space=vmem, size = 0x4000, scoped, tag = 'input window, operand 4, single buffered']
    #allocation11 [shape = 's32[1]{0}', space=sflag, size = 0x4, scoped, tag = 'scoped memory for tpu_custom_call.1']
    #allocation12 [shape = 'u8[32768]{0}', space=vmem, size = 0x8000, scoped, tag = 'input window, operand 7, single buffered']
    #allocation13 [shape = 'u8[8192]{0}', space=vmem, size = 0x2000, scoped, tag = 'output window, operand 0']
    #allocation14 [shape = 'u8[8192]{0}', space=vmem, size = 0x2000, scoped, tag = 'output window, operand 1']
    #allocation15 [shape = 's32[2]{0}', space=sflag, size = 0x8, scoped, tag = 'scoped memory for tpu_custom_call.1']
    %24 = vsyncpa [#allocation5], 0
    %s25 = scalar_lea.sflag [#allocation5], 1
    %26 = vsyncpa %s25, 0
    %27 = vsyncpa [#allocation8], 0
    %s28 = scalar_lea.sflag [#allocation8], 1
    %29 = vsyncpa %s28, 0
    %30 = vsyncpa [#allocation11], 0
    %31 = vsyncpa [#allocation6], 0
    %s32 = scalar_lea.sflag [#allocation6], 1
    %33 = vsyncpa %s32, 0
    %34 = vsyncpa [#allocation15], 0
    %s35 = scalar_lea.sflag [#allocation15], 1
    %36 = vsyncpa %s35, 0
    loop: start=0, step=1, limit=4
    $region2: #{tpu_custom_call.1} parent=1 // loop_pre_header
      _
    $region3: #{tpu_custom_call.1} parent=1 // loop_header
      %s38 = sphi 0, %s42
      %p39 = scmp.ge.s32.totalorder %s38, 4
      %s48 = sphi 0, %s50
      %s51 = sphi 0, %s48
      %s52 = sphi 0, %s51
      %s68 = sphi 0, %s52
      %s74 = sphi 0, %s76
      %s77 = sphi 0, %s74
      %s78 = sphi 0, %s77
      %s94 = sphi 0, %s78
      %s98 = sphi 0, %s98
      %s100 = sphi 0, %s98
      %s101 = sphi 0, %s100
      %s115 = sphi 0, %s101
      %s119 = sphi 0, %s119
      %s121 = sphi 0, %s119
      %s122 = sphi 0, %s121
      %s136 = sphi 0, %s122
      %s140 = sphi 0, %s140
      %s142 = sphi 0, %s140
      %s143 = sphi 0, %s142
      %s157 = sphi 0, %s143
      %s161 = sphi 0, %s161
      %s163 = sphi 0, %s161
      %s164 = sphi 0, %s163
      %s178 = sphi 0, %s164
      %s182 = sphi 0, %s182
      %s184 = sphi 0, %s182
      %s185 = sphi 0, %s184
      %s199 = sphi 0, %s185
      %s203 = sphi 0, %s203
      %s205 = sphi 0, %s203
      %s206 = sphi 0, %s205
      %s220 = sphi 0, %s206
      %s226 = sphi 0, %s228
      %s229 = sphi 0, %s226
      %s230 = sphi 0, %s229
      %s246 = sphi 0, %s230
      %s252 = sphi 0, %s254
      %s255 = sphi 0, %s252
      %s256 = sphi 0, %s255
      %s272 = sphi 0, %s256
    $region4: #{tpu_custom_call.1} parent=1 // loop_header_branch
      %41 = sbr.rel (%p39) target = $region8
    $region5: #{tpu_custom_call.1} parent=1 // loop_body
      %s43 = ssub.s32 %s38, 1
      %s44 = ssub.s32 %s38, 2
      %s45 = sadd.s32 %s38, 1
      %s46 = ssub.s32 %s38, %s45
      %p47 = scmp.eq.s32.totalorder %s46, 0
      %s49 = sadd.s32 %s48, 1
      %s50 = scalar_select %p47, %s48, %s49
      %p53 = pneg %p47
      %p54 = scmp.eq.s32.totalorder %s38, 1
      %p55 = por %p53, %p54
      %p56 = scmp.ne.s32.totalorder %s48, %s51
      %p57 = scmp.eq.s32.totalorder %s38, 0
      %p58 = por %p56, %p57
      %p59 = scmp.ne.s32.totalorder %s48, %s51
      %p60 = scmp.eq.s32.totalorder %s43, 1
      %p61 = por %p59, %p60
      %p62 = scmp.ne.s32.totalorder %s51, %s52
      %p63 = scmp.eq.s32.totalorder %s43, 0
      %p64 = por %p62, %p63
      %p65 = scmp.ne.s32.totalorder %s51, %s52
      %p66 = scmp.eq.s32.totalorder %s44, 1
      %p67 = por %p65, %p66
      %p69 = scmp.ne.s32.totalorder %s52, %s68
      %p70 = scmp.eq.s32.totalorder %s44, 0
      %p71 = por %p69, %p70
      %s72 = ssub.s32 %s38, %s45
      %p73 = scmp.eq.s32.totalorder %s72, 0
      %s75 = sadd.s32 %s74, 1
      %s76 = scalar_select %p73, %s74, %s75
      %p79 = pneg %p73
      %p80 = scmp.eq.s32.totalorder %s38, 1
      %p81 = por %p79, %p80
      %p82 = scmp.ne.s32.totalorder %s74, %s77
      %p83 = scmp.eq.s32.totalorder %s38, 0
      %p84 = por %p82, %p83
      %p85 = scmp.ne.s32.totalorder %s74, %s77
      %p86 = scmp.eq.s32.totalorder %s43, 1
      %p87 = por %p85, %p86
      %p88 = scmp.ne.s32.totalorder %s77, %s78
      %p89 = scmp.eq.s32.totalorder %s43, 0
      %p90 = por %p88, %p89
      %p91 = scmp.ne.s32.totalorder %s77, %s78
      %p92 = scmp.eq.s32.totalorder %s44, 1
      %p93 = por %p91, %p92
      %p95 = scmp.ne.s32.totalorder %s78, %s94
      %p96 = scmp.eq.s32.totalorder %s44, 0
      %p97 = por %p95, %p96
      %s99 = sadd.s32 %s98, 1
      %p102 = scmp.eq.s32.totalorder %s38, 1
      %p103 = scmp.ne.s32.totalorder %s98, %s100
      %p104 = scmp.eq.s32.totalorder %s38, 0
      %p105 = por %p103, %p104
      %p106 = scmp.ne.s32.totalorder %s98, %s100
      %p107 = scmp.eq.s32.totalorder %s43, 1
      %p108 = por %p106, %p107
      %p109 = scmp.ne.s32.totalorder %s100, %s101
      %p110 = scmp.eq.s32.totalorder %s43, 0
      %p111 = por %p109, %p110
      %p112 = scmp.ne.s32.totalorder %s100, %s101
      %p113 = scmp.eq.s32.totalorder %s44, 1
      %p114 = por %p112, %p113
      %p116 = scmp.ne.s32.totalorder %s101, %s115
      %p117 = scmp.eq.s32.totalorder %s44, 0
      %p118 = por %p116, %p117
      %s120 = sadd.s32 %s119, 1
      %p123 = scmp.eq.s32.totalorder %s38, 1
      %p124 = scmp.ne.s32.totalorder %s119, %s121
      %p125 = scmp.eq.s32.totalorder %s38, 0
      %p126 = por %p124, %p125
      %p127 = scmp.ne.s32.totalorder %s119, %s121
      %p128 = scmp.eq.s32.totalorder %s43, 1
      %p129 = por %p127, %p128
      %p130 = scmp.ne.s32.totalorder %s121, %s122
      %p131 = scmp.eq.s32.totalorder %s43, 0
      %p132 = por %p130, %p131
      %p133 = scmp.ne.s32.totalorder %s121, %s122
      %p134 = scmp.eq.s32.totalorder %s44, 1
      %p135 = por %p133, %p134
      %p137 = scmp.ne.s32.totalorder %s122, %s136
      %p138 = scmp.eq.s32.totalorder %s44, 0
      %p139 = por %p137, %p138
      %s141 = sadd.s32 %s140, 1
      %p144 = scmp.eq.s32.totalorder %s38, 1
      %p145 = scmp.ne.s32.totalorder %s140, %s142
      %p146 = scmp.eq.s32.totalorder %s38, 0
      %p147 = por %p145, %p146
      %p148 = scmp.ne.s32.totalorder %s140, %s142
      %p149 = scmp.eq.s32.totalorder %s43, 1
      %p150 = por %p148, %p149
      %p151 = scmp.ne.s32.totalorder %s142, %s143
      %p152 = scmp.eq.s32.totalorder %s43, 0
      %p153 = por %p151, %p152
      %p154 = scmp.ne.s32.totalorder %s142, %s143
      %p155 = scmp.eq.s32.totalorder %s44, 1
      %p156 = por %p154, %p155
      %p158 = scmp.ne.s32.totalorder %s143, %s157
      %p159 = scmp.eq.s32.totalorder %s44, 0
      %p160 = por %p158, %p159
      %s162 = sadd.s32 %s161, 1
      %p165 = scmp.eq.s32.totalorder %s38, 1
      %p166 = scmp.ne.s32.totalorder %s161, %s163
      %p167 = scmp.eq.s32.totalorder %s38, 0
      %p168 = por %p166, %p167
      %p169 = scmp.ne.s32.totalorder %s161, %s163
      %p170 = scmp.eq.s32.totalorder %s43, 1
      %p171 = por %p169, %p170
      %p172 = scmp.ne.s32.totalorder %s163, %s164
      %p173 = scmp.eq.s32.totalorder %s43, 0
      %p174 = por %p172, %p173
      %p175 = scmp.ne.s32.totalorder %s163, %s164
      %p176 = scmp.eq.s32.totalorder %s44, 1
      %p177 = por %p175, %p176
      %p179 = scmp.ne.s32.totalorder %s164, %s178
      %p180 = scmp.eq.s32.totalorder %s44, 0
      %p181 = por %p179, %p180
      %s183 = sadd.s32 %s182, 1
      %p186 = scmp.eq.s32.totalorder %s38, 1
      %p187 = scmp.ne.s32.totalorder %s182, %s184
      %p188 = scmp.eq.s32.totalorder %s38, 0
      %p189 = por %p187, %p188
      %p190 = scmp.ne.s32.totalorder %s182, %s184
      %p191 = scmp.eq.s32.totalorder %s43, 1
      %p192 = por %p190, %p191
      %p193 = scmp.ne.s32.totalorder %s184, %s185
      %p194 = scmp.eq.s32.totalorder %s43, 0
      %p195 = por %p193, %p194
      %p196 = scmp.ne.s32.totalorder %s184, %s185
      %p197 = scmp.eq.s32.totalorder %s44, 1
      %p198 = por %p196, %p197
      %p200 = scmp.ne.s32.totalorder %s185, %s199
      %p201 = scmp.eq.s32.totalorder %s44, 0
      %p202 = por %p200, %p201
      %s204 = sadd.s32 %s203, 1
      %p207 = scmp.eq.s32.totalorder %s38, 1
      %p208 = scmp.ne.s32.totalorder %s203, %s205
      %p209 = scmp.eq.s32.totalorder %s38, 0
      %p210 = por %p208, %p209
      %p211 = scmp.ne.s32.totalorder %s203, %s205
      %p212 = scmp.eq.s32.totalorder %s43, 1
      %p213 = por %p211, %p212
      %p214 = scmp.ne.s32.totalorder %s205, %s206
      %p215 = scmp.eq.s32.totalorder %s43, 0
      %p216 = por %p214, %p215
      %p217 = scmp.ne.s32.totalorder %s205, %s206
      %p218 = scmp.eq.s32.totalorder %s44, 1
      %p219 = por %p217, %p218
      %p221 = scmp.ne.s32.totalorder %s206, %s220
      %p222 = scmp.eq.s32.totalorder %s44, 0
      %p223 = por %p221, %p222
      %s224 = ssub.s32 %s38, %s45
      %p225 = scmp.eq.s32.totalorder %s224, 0
      %s227 = sadd.s32 %s226, 1
      %s228 = scalar_select %p225, %s226, %s227
      %p231 = pneg %p225
      %p232 = scmp.eq.s32.totalorder %s38, 1
      %p233 = por %p231, %p232
      %p234 = scmp.ne.s32.totalorder %s226, %s229
      %p235 = scmp.eq.s32.totalorder %s38, 0
      %p236 = por %p234, %p235
      %p237 = scmp.ne.s32.totalorder %s226, %s229
      %p238 = scmp.eq.s32.totalorder %s43, 1
      %p239 = por %p237, %p238
      %p240 = scmp.ne.s32.totalorder %s229, %s230
      %p241 = scmp.eq.s32.totalorder %s43, 0
      %p242 = por %p240, %p241
      %p243 = scmp.ne.s32.totalorder %s229, %s230
      %p244 = scmp.eq.s32.totalorder %s44, 1
      %p245 = por %p243, %p244
      %p247 = scmp.ne.s32.totalorder %s230, %s246
      %p248 = scmp.eq.s32.totalorder %s44, 0
      %p249 = por %p247, %p248
      %s250 = ssub.s32 %s38, %s45
      %p251 = scmp.eq.s32.totalorder %s250, 0
      %s253 = sadd.s32 %s252, 1
      %s254 = scalar_select %p251, %s252, %s253
      %p257 = pneg %p251
      %p258 = scmp.eq.s32.totalorder %s38, 1
      %p259 = por %p257, %p258
      %p260 = scmp.ne.s32.totalorder %s252, %s255
      %p261 = scmp.eq.s32.totalorder %s38, 0
      %p262 = por %p260, %p261
      %p263 = scmp.ne.s32.totalorder %s252, %s255
      %p264 = scmp.eq.s32.totalorder %s43, 1
      %p265 = por %p263, %p264
      %p266 = scmp.ne.s32.totalorder %s255, %s256
      %p267 = scmp.eq.s32.totalorder %s43, 0
      %p268 = por %p266, %p267
      %p269 = scmp.ne.s32.totalorder %s255, %s256
      %p270 = scmp.eq.s32.totalorder %s44, 1
      %p271 = por %p269, %p270
      %p273 = scmp.ne.s32.totalorder %s256, %s272
      %p274 = scmp.eq.s32.totalorder %s44, 0
      %p275 = por %p273, %p274
      %p276 = scmp.le.s32.totalorder 1, %s38
      %p277 = scmp.lt.s32.totalorder %s38, 3
      %p278 = pnand %p276, %p277
      %p279 = pneg %p278
      // Predicated region
      $region9: #{tpu_custom_call.1} parent=5 // pred_check
        _
      $region10: #{tpu_custom_call.1} parent=5 // pred_check_branch
        %281 = sbr.rel (%p278) target = $region12
      $region11: #{tpu_custom_call.1} parent=5 // pred_region
        %s282 = ssub.s32 %s38, 1
        // Predicated region
        $region13: #{tpu_custom_call.1} parent=11 // pred_check
          %p283 = pneg %p111
        $region14: #{tpu_custom_call.1} parent=11 // pred_check_branch
          %285 = sbr.rel (%p283) target = $region16
        $region15: #{tpu_custom_call.1} parent=11 // pred_region
          %287 = vsyncadd [#allocation8], 0
          %s288 = sshll.u32 %s3, 4
          %s289 = int_to_ptr.hbm [resolvable:$true] %s288
          %s290 = sshll.u32 [#allocation9], 4
          %s291 = int_to_ptr.vmem [resolvable:$true] %s290
          %296 = dma.hbm_to_vmem [thread:$0]  %s289, 512, %s291, [#allocation8], 128, 128, 8
        $region16: #{tpu_custom_call.1} parent=11 // pred_fallthru
          _
        // Predicated region
        $region17: #{tpu_custom_call.1} parent=11 // pred_check
          %p297 = pneg %p132
        $region18: #{tpu_custom_call.1} parent=11 // pred_check_branch
          %299 = sbr.rel (%p297) target = $region20
        $region19: #{tpu_custom_call.1} parent=11 // pred_region
          %301 = vsyncadd [#allocation11], 0
          %s302 = sshll.u32 %s4, 4
          %s303 = int_to_ptr.hbm [resolvable:$true] %s302
          %s304 = sshll.u32 [#allocation10], 4
          %s305 = int_to_ptr.vmem [resolvable:$true] %s304
          %310 = dma.hbm_to_vmem [thread:$0]  %s303, 512, %s305, [#allocation11], 128, 128, 8
        $region20: #{tpu_custom_call.1} parent=11 // pred_fallthru
          _
        // Predicated region
        $region21: #{tpu_custom_call.1} parent=11 // pred_check
          %p311 = pneg %p153
        $region22: #{tpu_custom_call.1} parent=11 // pred_check_branch
          %313 = sbr.rel (%p311) target = $region24
        $region23: #{tpu_custom_call.1} parent=11 // pred_region
          _
        $region24: #{tpu_custom_call.1} parent=11 // pred_fallthru
          _
        // Predicated region
        $region25: #{tpu_custom_call.1} parent=11 // pred_check
          %p314 = pneg %p174
        $region26: #{tpu_custom_call.1} parent=11 // pred_check_branch
          %316 = sbr.rel (%p314) target = $region28
        $region27: #{tpu_custom_call.1} parent=11 // pred_region
          _
        $region28: #{tpu_custom_call.1} parent=11 // pred_fallthru
          _
        // Predicated region
        $region29: #{tpu_custom_call.1} parent=11 // pred_check
          %p317 = pneg %p195
        $region30: #{tpu_custom_call.1} parent=11 // pred_check_branch
          %319 = sbr.rel (%p317) target = $region32
        $region31: #{tpu_custom_call.1} parent=11 // pred_region
          %321 = vsyncadd [#allocation11], 0
          %s322 = sshll.u32 %s7, 4
          %s323 = int_to_ptr.hbm [resolvable:$true] %s322
          %s324 = sshll.u32 [#allocation12], 4
          %s325 = int_to_ptr.vmem [resolvable:$true] %s324
          %330 = dma.hbm_to_vmem [thread:$0]  %s323, 1024, %s325, [#allocation11], 128, 128, 8
        $region32: #{tpu_custom_call.1} parent=11 // pred_fallthru
          _
        // Predicated region
        $region33: #{tpu_custom_call.1} parent=11 // pred_check
          %p331 = pneg %p216
        $region34: #{tpu_custom_call.1} parent=11 // pred_check_branch
          %333 = sbr.rel (%p331) target = $region36
        $region35: #{tpu_custom_call.1} parent=11 // pred_region
          _
        $region36: #{tpu_custom_call.1} parent=11 // pred_fallthru
          _
      $region12: #{tpu_custom_call.1} parent=5 // pred_fallthru
        _
      %p334 = scmp.lt.s32.totalorder %s38, 2
      // Predicated region
      $region37: #{tpu_custom_call.1} parent=5 // pred_check
        %p335 = pneg %p334
      $region38: #{tpu_custom_call.1} parent=5 // pred_check_branch
        %337 = sbr.rel (%p335) target = $region40
      $region39: #{tpu_custom_call.1} parent=5 // pred_region
        // Predicated region
        $region41: #{tpu_custom_call.1} parent=39 // pred_check
          %p338 = pneg %p58
        $region42: #{tpu_custom_call.1} parent=39 // pred_check_branch
          %340 = sbr.rel (%p338) target = $region44
        $region43: #{tpu_custom_call.1} parent=39 // pred_region
          %s341 = sand.u32 %s48, 1
          %s342 = scalar_lea.sflag [#allocation5], %s341
          %s343 = sand.u32 %s48, 1
          %s344 = smul.addr %s343, 8
          %s345 = scalar_lea.vmem [#allocation4], %s344
          %347 = vsyncadd %s342, 0
          %s348 = smul.addr %s38, 8
          %s349 = scalar_lea.hbm %s1, %s348
          %s351 = sshll.u32 %s349, 4
          %s352 = int_to_ptr.hbm [resolvable:$true] %s351
          %s353 = sshll.u32 %s345, 4
          %s354 = int_to_ptr.vmem [resolvable:$true] %s353
          %356 = dma.hbm_to_vmem [thread:$0]  %s352, 128, %s354, %s342
        $region44: #{tpu_custom_call.1} parent=39 // pred_fallthru
          _
        // Predicated region
        $region45: #{tpu_custom_call.1} parent=39 // pred_check
          %p357 = pneg %p84
        $region46: #{tpu_custom_call.1} parent=39 // pred_check_branch
          %359 = sbr.rel (%p357) target = $region48
        $region47: #{tpu_custom_call.1} parent=39 // pred_region
          %s360 = sand.u32 %s38, 1
          %s361 = scalar_lea.sflag [#allocation8], %s360
          %s362 = sand.u32 %s74, 1
          %s363 = smul.addr %s362, 8
          %s364 = scalar_lea.vmem [#allocation7], %s363
          %366 = vsyncadd %s361, 0
          %s367 = smul.addr %s38, 8
          %s368 = scalar_lea.hbm %s2, %s367
          %s370 = sshll.u32 %s368, 4
          %s371 = int_to_ptr.hbm [resolvable:$true] %s370
          %s372 = sshll.u32 %s364, 4
          %s373 = int_to_ptr.vmem [resolvable:$true] %s372
          %375 = dma.hbm_to_vmem [thread:$0]  %s371, 128, %s373, %s361
        $region48: #{tpu_custom_call.1} parent=39 // pred_fallthru
          _
      $region40: #{tpu_custom_call.1} parent=5 // pred_fallthru
        _
      %p376 = scmp.le.s32.totalorder 1, %s38
      %p377 = scmp.lt.s32.totalorder %s38, 3
      %p378 = pnand %p376, %p377
      %p379 = pneg %p378
      // Predicated region
      $region49: #{tpu_custom_call.1} parent=5 // pred_check
        _
      $region50: #{tpu_custom_call.1} parent=5 // pred_check_branch
        %381 = sbr.rel (%p378) target = $region52
      $region51: #{tpu_custom_call.1} parent=5 // pred_region
        %s382 = ssub.s32 %s38, 1
        %s383 = sand.u32 %s51, 1
        %s384 = scalar_lea.sflag [#allocation5], %s383
        %s385 = sand.u32 %s51, 1
        %s386 = smul.addr %s385, 8
        %s387 = scalar_lea.vmem [#allocation4], %s386
        // Predicated region
        $region53: #{tpu_custom_call.1} parent=51 // pred_check
          %p388 = pneg %p64
        $region54: #{tpu_custom_call.1} parent=51 // pred_check_branch
          %390 = sbr.rel (%p388) target = $region56
        $region55: #{tpu_custom_call.1} parent=51 // pred_region
          %392 = dma.done %s384, 128
        $region56: #{tpu_custom_call.1} parent=51 // pred_fallthru
          _
        %s393 = sand.u32 %s43, 1
        %s394 = scalar_lea.sflag [#allocation8], %s393
        %s395 = sand.u32 %s77, 1
        %s396 = smul.addr %s395, 8
        %s397 = scalar_lea.vmem [#allocation7], %s396
        // Predicated region
        $region57: #{tpu_custom_call.1} parent=51 // pred_check
          %p398 = pneg %p90
        $region58: #{tpu_custom_call.1} parent=51 // pred_check_branch
          %400 = sbr.rel (%p398) target = $region60
        $region59: #{tpu_custom_call.1} parent=51 // pred_region
          %402 = dma.done %s394, 128
        $region60: #{tpu_custom_call.1} parent=51 // pred_fallthru
          _
        // Predicated region
        $region61: #{tpu_custom_call.1} parent=51 // pred_check
          %p403 = pneg %p111
        $region62: #{tpu_custom_call.1} parent=51 // pred_check_branch
          %405 = sbr.rel (%p403) target = $region64
        $region63: #{tpu_custom_call.1} parent=51 // pred_region
          %407 = dma.done [#allocation8], 512
        $region64: #{tpu_custom_call.1} parent=51 // pred_fallthru
          _
        // Predicated region
        $region65: #{tpu_custom_call.1} parent=51 // pred_check
          %p408 = pneg %p132
        $region66: #{tpu_custom_call.1} parent=51 // pred_check_branch
          %410 = sbr.rel (%p408) target = $region68
        $region67: #{tpu_custom_call.1} parent=51 // pred_region
          %412 = dma.done [#allocation11], 512
        $region68: #{tpu_custom_call.1} parent=51 // pred_fallthru
          _
        // Predicated region
        $region69: #{tpu_custom_call.1} parent=51 // pred_check
          %p413 = pneg %p195
        $region70: #{tpu_custom_call.1} parent=51 // pred_check_branch
          %415 = sbr.rel (%p413) target = $region72
        $region71: #{tpu_custom_call.1} parent=51 // pred_region
          %417 = dma.done [#allocation11], 1024
        $region72: #{tpu_custom_call.1} parent=51 // pred_fallthru
          _
        %s418 = sand.u32 %s51, 1
        %s419 = scalar_lea.sflag [#allocation5], %s418
        %s420 = sand.u32 %s51, 1
        %s421 = smul.addr %s420, 8
        %s422 = scalar_lea.vmem [#allocation4], %s421
        %p423 = pneg %p64
        %p424 = pneg %p61
        %s425 = sand.u32 %s43, 1
        %s426 = scalar_lea.sflag [#allocation8], %s425
        %s427 = sand.u32 %s77, 1
        %s428 = smul.addr %s427, 8
        %s429 = scalar_lea.vmem [#allocation7], %s428
        %p430 = pneg %p90
        %p431 = pneg %p87
        %p432 = pneg %p111
        %p433 = pneg %p108
        %p434 = pneg %p132
        %p435 = pneg %p129
        %p436 = pneg %p153
        %p437 = pneg %p150
        %p438 = pneg %p174
        %p439 = pneg %p171
        %p440 = pneg %p195
        %p441 = pneg %p192
        %p442 = pneg %p216
        %p443 = pneg %p213
        %p444 = pneg %p242
        %p445 = pneg %p239
        %s446 = sand.u32 %s229, 1
        %s447 = scalar_lea.sflag [#allocation6], %s446
        %s448 = sand.u32 %s229, 1
        %s449 = smul.addr %s448, 8
        %s450 = scalar_lea.vmem [#allocation13], %s449
        %p451 = pneg %p268
        %p452 = pneg %p265
        %s453 = sand.u32 %s255, 1
        %s454 = scalar_lea.sflag [#allocation15], %s453
        %s455 = sand.u32 %s255, 1
        %s456 = smul.addr %s455, 8
        %s457 = scalar_lea.vmem [#allocation14], %s456
        %v458 = vld [vmem:[%s387] sm:$0xff]
        %v459 = vld [vmem:[%s397] sm:$0xff]
        %v460 = vld [vmem:[#allocation9] sm:$0xff]
        %v461 = vld [vmem:[#allocation9 + $0x8] sm:$0xff]
        %v462 = vld [vmem:[#allocation9 + $0x10] sm:$0xff]
        %v463 = vld [vmem:[#allocation9 + $0x18] sm:$0xff]
        %vm464 = vcmask 261120
        %v466 = vsel %vm464, %v458, 0
        %468 = vmatpush.msra.mxu0 0.0
        %469 = vmatpush.msra.mxu0 0.0
        %470 = vmatpush.msra.mxu0 0.0
        %471 = vmatpush.msra.mxu0 0.0
        %472 = vmatpush.msra.mxu0 0.0
        %473 = vmatpush.msra.mxu0 0.0
        %474 = vmatpush.msra.mxu0 0.0
        %475 = vmatpush.msra.mxu0 0.0
        %476 = vmatpush.msra.mxu0 0.0
        %477 = vmatpush.msra.mxu0 0.0
        %478 = vmatpush.msra.mxu0 0.0
        %479 = vmatpush.msra.mxu0 0.0
        %480 = vmatpush.msra.mxu0 %v463
        %481 = vmatpush.msra.mxu0 %v462
        %482 = vmatpush.msra.mxu0 %v461
        %483 = vmatpush.msra.mxu0 %v460
        %484 = vmatmul.f32.gmra.mxu0 %v466
        %v485 = vpop.f32.mrf.mxu0
        %v486 = vadd.f32 0.0, %v485
        %487 = vdwg.mxu0
        %v488 = vld [vmem:[#allocation10] sm:$0xff]
        %v489 = vld [vmem:[#allocation10 + $0x8] sm:$0xff]
        %v490 = vld [vmem:[#allocation10 + $0x10] sm:$0xff]
        %v491 = vld [vmem:[#allocation10 + $0x18] sm:$0xff]
        %v492 = vld [vmem:[%s5] sm:$0x1]
        %v494 = vperm.slane %v492, 0
        %v497 = vsel %vm464, %v459, 0
        %499 = vmatpush.msra.mxu0 0.0
        %500 = vmatpush.msra.mxu0 0.0
        %501 = vmatpush.msra.mxu0 0.0
        %502 = vmatpush.msra.mxu0 0.0
        %503 = vmatpush.msra.mxu0 0.0
        %504 = vmatpush.msra.mxu0 0.0
        %505 = vmatpush.msra.mxu0 0.0
        %506 = vmatpush.msra.mxu0 0.0
        %507 = vmatpush.msra.mxu0 0.0
        %508 = vmatpush.msra.mxu0 0.0
        %509 = vmatpush.msra.mxu0 0.0
        %510 = vmatpush.msra.mxu0 0.0
        %511 = vmatpush.msra.mxu0 %v491
        %512 = vmatpush.msra.mxu0 %v490
        %513 = vmatpush.msra.mxu0 %v489
        %514 = vmatpush.msra.mxu0 %v488
        %515 = vmatmul.f32.gmra.mxu0 %v497
        %v516 = vpop.f32.mrf.mxu0
        %v517 = vadd.f32 %v494, %v516
        %518 = vdwg.mxu0
        %v519 = vld [vmem:[%s6] sm:$0x1]
        %v520 = vlaneseq
        %v521 = vand.u32 %v520, 127
        %v523 = vrot.slane %v486, 1
        %v524 = vrot.slane %v486, 2
        %v525 = vrot.slane %v486, 3
        %v526 = vrot.slane %v486, 4
        %v527 = vrot.slane %v486, 5
        %v528 = vrot.slane %v486, 6
        %v529 = vrot.slane %v486, 7
        %v530 = vperm.slane %v486, 0
        %v531 = vperm.slane %v523, 0
        %v532 = vperm.slane %v524, 0
        %v533 = vperm.slane %v525, 0
        %v534 = vperm.slane %v526, 0
        %v535 = vperm.slane %v527, 0
        %v536 = vperm.slane %v528, 0
        %v537 = vperm.slane %v529, 0
        %v546 = vadd.f32 %v530, %v517
        %v547 = vadd.f32 %v531, %v517
        %v548 = vadd.f32 %v532, %v517
        %v549 = vadd.f32 %v533, %v517
        %v550 = vadd.f32 %v534, %v517
        %v551 = vadd.f32 %v535, %v517
        %v552 = vadd.f32 %v536, %v517
        %v553 = vadd.f32 %v537, %v517
        %v554 = vtanh.pop %v546
        %v555 = vtanh.pop %v547
        %v556 = vtanh.pop %v548
        %v557 = vtanh.pop %v549
        %v558 = vtanh.pop %v550
        %v559 = vtanh.pop %v551
        %v560 = vtanh.pop %v552
        %v561 = vtanh.pop %v553
        %v563 = vperm.slane %v519, 0
        %v565 = vmul.f32 %v554, %v563
        %v566 = vmul.f32 %v555, %v563
        %v567 = vmul.f32 %v556, %v563
        %v568 = vmul.f32 %v557, %v563
        %v569 = vmul.f32 %v558, %v563
        %v570 = vmul.f32 %v559, %v563
        %v571 = vmul.f32 %v560, %v563
        %v572 = vmul.f32 %v561, %v563
        %v573 = vsel %vm464, %v565, 0.0
        %574 = vadd.xlane.f32.xlu0 %v573
        %v575 = vpop.xlane.xlu0 %574
        %v576 = vsel %vm464, %v566, 0.0
        %577 = vadd.xlane.f32.xlu0 %v576
        %v578 = vpop.xlane.xlu0 %577
        %v579 = vsel %vm464, %v567, 0.0
        %580 = vadd.xlane.f32.xlu0 %v579
        %v581 = vpop.xlane.xlu0 %580
        %v582 = vsel %vm464, %v568, 0.0
        %583 = vadd.xlane.f32.xlu0 %v582
        %v584 = vpop.xlane.xlu0 %583
        %v585 = vsel %vm464, %v569, 0.0
        %586 = vadd.xlane.f32.xlu0 %v585
        %v587 = vpop.xlane.xlu0 %586
        %v588 = vsel %vm464, %v570, 0.0
        %589 = vadd.xlane.f32.xlu0 %v588
        %v590 = vpop.xlane.xlu0 %589
        %v591 = vsel %vm464, %v571, 0.0
        %592 = vadd.xlane.f32.xlu0 %v591
        %v593 = vpop.xlane.xlu0 %592
        %v594 = vsel %vm464, %v572, 0.0
        %595 = vadd.xlane.f32.xlu0 %v594
        %v596 = vpop.xlane.xlu0 %595
        %s597 = sld [smem:[#allocation3 + %s43]]
        %v598 = vstv %s597
        %vm599 = vcmp.lt.s32.totalorder %v521, %v598
        %v608 = vperm.slane %v575, %v521
        %v609 = vperm.slane %v578, %v521
        %v610 = vperm.slane %v581, %v521
        %v611 = vperm.slane %v584, %v521
        %v612 = vperm.slane %v587, %v521
        %v613 = vperm.slane %v590, %v521
        %v614 = vperm.slane %v593, %v521
        %v615 = vperm.slane %v596, %v521
        %vm616 = vcmask 1041409
        %v617 = vsel %vm616, %v609, %v608
        %vm618 = vcmask 1042434
        %v619 = vsel %vm618, %v610, %v617
        %vm620 = vcmask 1043459
        %v621 = vsel %vm620, %v611, %v619
        %vm622 = vcmask 1044484
        %v623 = vsel %vm622, %v612, %v621
        %vm624 = vcmask 1045509
        %v625 = vsel %vm624, %v613, %v623
        %vm626 = vcmask 1046534
        %v627 = vsel %vm626, %v614, %v625
        %vm628 = vcmask 1047559
        %v629 = vsel %vm628, %v615, %v627
        %v631 = vsel %vm599, %v629, -1e+30
        %vm632 = vcmask 64512
        %v633 = vsel %vm632, %v631, -inf
        %634 = vmax.xlane.f32.xlu0 %v633
        %v635 = vpop.xlane.xlu0 %634
        %v636 = vsub.f32 %v631, %v635
        %v637 = vmul.f32 %v636, 1.442695
        %v638 = vpow.pop %v637
        %v639 = vsel %vm632, %v638, 0.0
        %640 = vadd.xlane.f32.xlu0 %v639
        %v641 = vpop.xlane.xlu0 %640
        %v642 = vrcp.pop %v641
        %v643 = vmul.f32 %v641, %v642
        %v644 = vsub.f32 2.0, %v643
        %v645 = vmul.f32 %v642, %v644
        %v646 = vmul.f32 %v638, %v645
        %v647 = vsel %vm632, %v646, 0.0
        %648 = vst [vmem:[%s457] sm:$0xff] %v647
        %v649 = vld [vmem:[%s397] sm:$0xff]
        %v651 = vsel %vm632, %v646, 0
        %653 = vmatpush.msra.mxu0 0.0
        %654 = vmatpush.msra.mxu0 0.0
        %655 = vmatpush.msra.mxu0 0.0
        %656 = vmatpush.msra.mxu0 0.0
        %657 = vmatpush.msra.mxu0 0.0
        %658 = vmatpush.msra.mxu0 0.0
        %659 = vmatpush.msra.mxu0 0.0
        %660 = vmatpush.msra.mxu0 0.0
        %661 = vmatpush.msra.mxu0 0.0
        %662 = vmatpush.msra.mxu0 0.0
        %663 = vmatpush.msra.mxu0 0.0
        %664 = vmatpush.msra.mxu0 0.0
        %665 = vmatpush.msra.mxu0 0.0
        %666 = vmatpush.msra.mxu0 0.0
        %667 = vmatpush.msra.mxu0 0.0
        %668 = vmatpush.msra.mxu0 %v649
        %669 = vmatmul.f32.gmra.mxu0 %v651
        %v670 = vpop.f32.mrf.mxu0
        %v671 = vadd.f32 0.0, %v670
        %672 = vdwg.mxu0
        %673 = vrot.lane.b32.xlu0 %v458, 32
        %v674 = vpop.permute.xlu0 %673
        %v676 = vsel %vm464, %v671, %v674
        %v677 = vld [vmem:[#allocation12] sm:$0xff]
        %v678 = vld [vmem:[#allocation12 + $0x8] sm:$0xff]
        %v679 = vld [vmem:[#allocation12 + $0x10] sm:$0xff]
        %v680 = vld [vmem:[#allocation12 + $0x18] sm:$0xff]
        %v681 = vld [vmem:[#allocation12 + $0x20] sm:$0xff]
        %v682 = vld [vmem:[#allocation12 + $0x28] sm:$0xff]
        %v683 = vld [vmem:[#allocation12 + $0x30] sm:$0xff]
        %v684 = vld [vmem:[#allocation12 + $0x38] sm:$0xff]
        %v685 = vld [vmem:[%s8] sm:$0x1]
        %v687 = vperm.slane %v685, 0
        %vm689 = vcmask 523264
        %v691 = vsel %vm689, %v676, 0
        %693 = vmatpush.msra.mxu0 0.0
        %694 = vmatpush.msra.mxu0 0.0
        %695 = vmatpush.msra.mxu0 0.0
        %696 = vmatpush.msra.mxu0 0.0
        %697 = vmatpush.msra.mxu0 0.0
        %698 = vmatpush.msra.mxu0 0.0
        %699 = vmatpush.msra.mxu0 0.0
        %700 = vmatpush.msra.mxu0 0.0
        %701 = vmatpush.msra.mxu0 %v684
        %702 = vmatpush.msra.mxu0 %v683
        %703 = vmatpush.msra.mxu0 %v682
        %704 = vmatpush.msra.mxu0 %v681
        %705 = vmatpush.msra.mxu0 %v680
        %706 = vmatpush.msra.mxu0 %v679
        %707 = vmatpush.msra.mxu0 %v678
        %708 = vmatpush.msra.mxu0 %v677
        %709 = vmatmul.f32.gmra.mxu0 %v691
        %v710 = vpop.f32.mrf.mxu0
        %v711 = vadd.f32 %v687, %v710
        %712 = vdwg.mxu0
        %713 = vst [vmem:[%s450] sm:$0xff] %v711
        %s714 = sand.u32 %s229, 1
        %s715 = scalar_lea.sflag [#allocation6], %s714
        %s716 = sand.u32 %s229, 1
        %s717 = smul.addr %s716, 8
        %s718 = scalar_lea.vmem [#allocation13], %s717
        %s719 = sand.u32 %s255, 1
        %s720 = scalar_lea.sflag [#allocation15], %s719
        %s721 = sand.u32 %s255, 1
        %s722 = smul.addr %s721, 8
        %s723 = scalar_lea.vmem [#allocation14], %s722
        // Predicated region
        $region73: #{tpu_custom_call.1} parent=51 // pred_check
          %p724 = pneg %p239
        $region74: #{tpu_custom_call.1} parent=51 // pred_check_branch
          %726 = sbr.rel (%p724) target = $region76
        $region75: #{tpu_custom_call.1} parent=51 // pred_region
          %728 = vsyncadd %s715, 0
          %s729 = smul.addr %s43, 8
          %s730 = scalar_lea.hbm %s9, %s729
          %s732 = sshll.u32 %s718, 4
          %s733 = int_to_ptr.vmem [resolvable:$true] %s732
          %s734 = sshll.u32 %s730, 4
          %s735 = int_to_ptr.hbm [resolvable:$true] %s734
          %737 = dma.vmem_to_hbm [thread:$0]  %s733, 128, %s735, %s715
        $region76: #{tpu_custom_call.1} parent=51 // pred_fallthru
          _
        // Predicated region
        $region77: #{tpu_custom_call.1} parent=51 // pred_check
          %p738 = pneg %p265
        $region78: #{tpu_custom_call.1} parent=51 // pred_check_branch
          %740 = sbr.rel (%p738) target = $region80
        $region79: #{tpu_custom_call.1} parent=51 // pred_region
          %742 = vsyncadd %s720, 0
          %s743 = smul.addr %s43, 8
          %s744 = scalar_lea.hbm %s10, %s743
          %s746 = sshll.u32 %s723, 4
          %s747 = int_to_ptr.vmem [resolvable:$true] %s746
          %s748 = sshll.u32 %s744, 4
          %s749 = int_to_ptr.hbm [resolvable:$true] %s748
          %751 = dma.vmem_to_hbm [thread:$0]  %s747, 128, %s749, %s720
        $region80: #{tpu_custom_call.1} parent=51 // pred_fallthru
          _
      $region52: #{tpu_custom_call.1} parent=5 // pred_fallthru
        _
      %p752 = scmp.le.s32.totalorder 2, %s38
      // Predicated region
      $region81: #{tpu_custom_call.1} parent=5 // pred_check
        %p753 = pneg %p752
      $region82: #{tpu_custom_call.1} parent=5 // pred_check_branch
        %755 = sbr.rel (%p753) target = $region84
      $region83: #{tpu_custom_call.1} parent=5 // pred_region
        %s756 = ssub.s32 %s38, 2
        // Predicated region
        $region85: #{tpu_custom_call.1} parent=83 // pred_check
          %p757 = pneg %p245
        $region86: #{tpu_custom_call.1} parent=83 // pred_check_branch
          %759 = sbr.rel (%p757) target = $region88
        $region87: #{tpu_custom_call.1} parent=83 // pred_region
          %s760 = sand.u32 %s230, 1
          %s761 = scalar_lea.sflag [#allocation6], %s760
          %s762 = sand.u32 %s230, 1
          %s763 = smul.addr %s762, 8
          %s764 = scalar_lea.vmem [#allocation13], %s763
          %766 = dma.done %s761, 128
        $region88: #{tpu_custom_call.1} parent=83 // pred_fallthru
          _
        // Predicated region
        $region89: #{tpu_custom_call.1} parent=83 // pred_check
          %p767 = pneg %p271
        $region90: #{tpu_custom_call.1} parent=83 // pred_check_branch
          %769 = sbr.rel (%p767) target = $region92
        $region91: #{tpu_custom_call.1} parent=83 // pred_region
          %s770 = sand.u32 %s256, 1
          %s771 = scalar_lea.sflag [#allocation15], %s770
          %s772 = sand.u32 %s256, 1
          %s773 = smul.addr %s772, 8
          %s774 = scalar_lea.vmem [#allocation14], %s773
          %776 = dma.done %s771, 128
        $region92: #{tpu_custom_call.1} parent=83 // pred_fallthru
          _
      $region84: #{tpu_custom_call.1} parent=5 // pred_fallthru
        _
    $region6: #{tpu_custom_call.1} parent=1 // loop_footer
      %s42 = sadd.s32 1, %s38
    $region7: #{tpu_custom_call.1} parent=1 // loop_footer_branch
      %37 = sbr.rel target = $region3
    $region8: #{tpu_custom_call.1} parent=1 // loop_exit
      _
    %777 = vsyncpa [#allocation5], 1
    %s778 = scalar_lea.sflag [#allocation5], 1
    %779 = vsyncpa %s778, 1
    %780 = vsyncpa [#allocation8], 1
    %s781 = scalar_lea.sflag [#allocation8], 1
    %782 = vsyncpa %s781, 1
    %783 = vsyncpa [#allocation11], 1
    %784 = vsyncpa [#allocation6], 1
    %s785 = scalar_lea.sflag [#allocation6], 1
    %786 = vsyncpa %s785, 1
    %787 = vsyncpa [#allocation15], 1
    %s788 = scalar_lea.sflag [#allocation15], 1
    %789 = vsyncpa %s788, 1

</llo_original>
